<compile_context>
chip_gen: v7x
topology: tpu7x:2x2x1
jax: 0.10.0
libtpu: 0.0.40
codegen_flags: <defaults>
</compile_context>

<pallas_src>
import functools

import jax
import jax.numpy as jnp
from jax import lax
from jax.experimental import pallas as pl
from jax.experimental.pallas import tpu as pltpu

_MIB = 1024 * 1024


def _round_up(n, m):
    return ((n + m - 1) // m) * m


# ---------------------------------------------------------------------------
# Kernels
# ---------------------------------------------------------------------------

def _mlp_kernel_bn(x_ref, w1_ref, b1_ref, w2_ref, b2_ref, w3_ref, b3_ref, out_ref,
                   *, compute_dtype):
    """Batch-on-sublanes path: x tile (tile_b, In), weights pre-transposed to (in, out).

    Every matmul is a plain (M,K)@(K,N) with K on the LHS lane axis / RHS sublane axis,
    so Mosaic never relayouts/transposes the large x tile.
    """
    x = x_ref[...].astype(compute_dtype)  # f32 callers cast here; bf16 callers are a no-op.

    h = jnp.dot(x, w1_ref[...], preferred_element_type=jnp.float32)        # (tile_b, H1)
    h = jnp.maximum(h + b1_ref[...], 0.0).astype(compute_dtype)
    # Dropout: identity (inference semantics).

    h = jnp.dot(h, w2_ref[...], preferred_element_type=jnp.float32)        # (tile_b, H2)
    h = jnp.maximum(h + b2_ref[...], 0.0).astype(compute_dtype)
    # Dropout: identity (inference semantics).

    o = jnp.dot(h, w3_ref[...], preferred_element_type=jnp.float32)        # (tile_b, 8); col 0 real
    out_ref[...] = (o[:, 0:1] + b3_ref[...]).astype(out_ref.dtype)


def _mlp_kernel_bl(xt_ref, w1_ref, b1_ref, w2_ref, b2_ref, w3_ref, b3_ref, out_ref,
                   *, compute_dtype):
    """Batch-on-lanes path: caller supplies x^T, streamed lane-dense as (In, tile_b)."""
    x = xt_ref[...].astype(compute_dtype)

    h = jnp.dot(w1_ref[...], x, preferred_element_type=jnp.float32)        # (H1, tile_b)
    h = jnp.maximum(h + b1_ref[...], 0.0).astype(compute_dtype)
    # Dropout: identity (inference semantics).

    h = jnp.dot(w2_ref[...], h, preferred_element_type=jnp.float32)        # (H2, tile_b)
    h = jnp.maximum(h + b2_ref[...], 0.0).astype(compute_dtype)
    # Dropout: identity (inference semantics).

    o = jnp.dot(w3_ref[...], h, preferred_element_type=jnp.float32) + b3_ref[...]  # (8, tile_b)
    out_ref[...] = o[0:1, :].astype(out_ref.dtype)   # lane-dense row store (row 0 is the head)


# ---------------------------------------------------------------------------
# Tiling / VMEM budgeting
# ---------------------------------------------------------------------------

def _vmem_limit_bytes():
    """Generation-aware scoped-VMEM budget (v7x: 64 MiB physical -> 48; v5e/v6e: 128 -> 96)."""
    cap = 64 * _MIB  # conservative default: assume v7x-class VMEM if the query fails
    try:
        info = pltpu.get_tpu_info()
        cap = getattr(info, "vmem_capacity_bytes", cap) or cap
    except Exception:
        pass
    if cap <= 64 * _MIB:
        return 48 * _MIB
    return 96 * _MIB


def _bytes_per_row_bn(in_f, h1, h2, x_itemsize):
    """Per-batch-row VMEM cost for the (B, In) path (last dims lane-padded to 128)."""
    lane = 128
    x_blk = 2 * _round_up(in_f, lane) * x_itemsize                 # double-buffered x tile
    temps = (_round_up(in_f, lane) * 2                              # x cast to compute dtype
             + _round_up(h1, lane) * (4 + 2)                        # h1 f32 + cast
             + _round_up(h2, lane) * (4 + 2)                        # h2 f32 + cast
             + _round_up(8, lane) * 4)                              # padded head output
    out_blk = 2 * lane * 4                                          # (tile_b, 1) output block
    return x_blk + temps + out_blk


def _bytes_per_row_bl(in_f, h1, h2, x_itemsize):
    """Per-batch-column VMEM cost for the transposed path (batch on lanes: everything dense)."""
    x_blk = 2 * _round_up(in_f, 8) * x_itemsize
    temps = (_round_up(in_f, 8) * 2
             + _round_up(h1, 8) * (4 + 2)
             + _round_up(h2, 8) * (4 + 2)
             + 8 * 4)
    out_blk = 2 * 8 * 4                                             # (1, tile_b) output block
    return x_blk + temps + out_blk


def _pick_tile(B, bytes_per_row, resident_bytes, vmem_limit, cap_rows=65536):
    """Biggest batch tile that fits the VMEM budget; keeps >=2 blocks for v7x megacore."""
    budget = max(vmem_limit - resident_bytes - 4 * _MIB, 2 * _MIB)
    t = int(budget // max(bytes_per_row, 1))
    t = max(128, min(t, cap_rows))
    if B <= t:
        if B >= 512:
            # Split so dimension_semantics=("parallel",) can shard the grid across 2 TensorCores.
            t = _round_up(pl.cdiv(B, 2), 128)
        else:
            return B, 1            # single exact block (tiny / oddly-sized batches)
    else:
        t = (t // 128) * 128       # multiple of 128: lane-dense output rows / clean sublane tiles
    return t, pl.cdiv(B, t)


# ---------------------------------------------------------------------------
# Public forward
# ---------------------------------------------------------------------------

def fully_connected_dnn3(x, params, *, x_transposed=False, compute_dtype=jnp.bfloat16):
    """FullyConnectedDNN3 forward pass (eval mode: dropout = identity).

    Args:
      x: activations.  (B, input_size) by default (PyTorch layout).  Pass the already-transposed
         (input_size, B) array with x_transposed=True for the fully lane-dense fast path.
         bf16 x halves the HBM stream; f32 x is cast to `compute_dtype` inside the kernel
         (no extra wrapper pass either way).
      params: PyTorch nn.Linear layout: w{1,2,3}: (out, in), b{1,2,3}: (out,).
      compute_dtype: MXU operand dtype (accumulation is always f32).  bf16 default;
         pass jnp.float32 for an f32-operand fallback if bf16 numerics are insufficient.

    Returns: (B, 1) float32.
    """
    w1, w2, w3 = params["w1"], params["w2"], params["w3"]
    b1, b2, b3 = params["b1"], params["b2"], params["b3"]
    H1, in_features = w1.shape
    H2 = w2.shape[0]
    B = x.shape[1] if x_transposed else x.shape[0]

    cd = compute_dtype
    w_itemsize = jnp.dtype(cd).itemsize
    vmem_limit = _vmem_limit_bytes()

    if x_transposed:
        # Batch-on-lanes: weights stay (out, in); head padded to 8 output rows (row 0 real).
        w1c = w1.astype(cd)
        w2c = w2.astype(cd)
        w3c = jnp.zeros((8, H2), cd).at[0, :].set(w3[0].astype(cd))
        b1c = b1.astype(jnp.float32).reshape(H1, 1)
        b2c = b2.astype(jnp.float32).reshape(H2, 1)
        b3c = jnp.zeros((8, 1), jnp.float32).at[0, 0].set(b3[0])
        resident = (w1c.size + w2c.size + w3c.size) * w_itemsize + (H1 + H2 + 8) * 4
        bpr = _bytes_per_row_bl(in_features, H1, H2, x.dtype.itemsize)
        tile_b, num_blocks = _pick_tile(B, bpr, resident, vmem_limit)

        grid_spec = pl.GridSpec(
            grid=(num_blocks,),
            in_specs=[
                pl.BlockSpec((in_features, tile_b), lambda i: (0, i)),  # x^T: lane-dense stream
                pl.BlockSpec((H1, in_features), lambda i: (0, 0)),      # weights: VMEM-resident
                pl.BlockSpec((H1, 1), lambda i: (0, 0)),
                pl.BlockSpec((H2, H1), lambda i: (0, 0)),
                pl.BlockSpec((H2, 1), lambda i: (0, 0)),
                pl.BlockSpec((8, H2), lambda i: (0, 0)),
                pl.BlockSpec((8, 1), lambda i: (0, 0)),
            ],
            out_specs=pl.BlockSpec((1, tile_b), lambda i: (0, i)),      # lane-dense output row
        )
        out_shape = jax.ShapeDtypeStruct((1, B), jnp.float32)
        kernel = functools.partial(_mlp_kernel_bl, compute_dtype=cd)
    else:
        # Batch-on-sublanes: weights pre-transposed to (in, out) -> no in-kernel relayout of x.
        w1c = w1.T.astype(cd)
        w2c = w2.T.astype(cd)
        w3c = jnp.zeros((H2, 8), cd).at[:, 0].set(w3[0].astype(cd))
        b1c = b1.astype(jnp.float32).reshape(1, H1)
        b2c = b2.astype(jnp.float32).reshape(1, H2)
        b3c = b3.astype(jnp.float32).reshape(1, 1)
        resident = (w1c.size + w2c.size + w3c.size) * w_itemsize + (H1 + H2 + 1) * 4
        bpr = _bytes_per_row_bn(in_features, H1, H2, x.dtype.itemsize)
        tile_b, num_blocks = _pick_tile(B, bpr, resident, vmem_limit)

        grid_spec = pl.GridSpec(
            grid=(num_blocks,),
            in_specs=[
                pl.BlockSpec((tile_b, in_features), lambda i: (i, 0)),  # x: streamed per tile
                pl.BlockSpec((in_features, H1), lambda i: (0, 0)),      # weights: VMEM-resident
                pl.BlockSpec((1, H1), lambda i: (0, 0)),
                pl.BlockSpec((H1, H2), lambda i: (0, 0)),
                pl.BlockSpec((1, H2), lambda i: (0, 0)),
                pl.BlockSpec((H2, 8), lambda i: (0, 0)),
                pl.BlockSpec((1, 1), lambda i: (0, 0)),
            ],
            out_specs=pl.BlockSpec((tile_b, 1), lambda i: (i, 0)),
        )
        out_shape = jax.ShapeDtypeStruct((B, 1), jnp.float32)
        kernel = functools.partial(_mlp_kernel_bn, compute_dtype=cd)

    operands = (x, w1c, b1c, w2c, b2c, w3c, b3c)
    flops = 2 * B * (in_features * H1 + H1 * H2 + H2 * 8)
    bytes_accessed = int(x.size * x.dtype.itemsize
                         + sum(a.size * a.dtype.itemsize for a in operands[1:])
                         + B * 4)

    out = pl.pallas_call(
        kernel,
        out_shape=out_shape,
        grid_spec=grid_spec,
        compiler_params=pltpu.CompilerParams(
            dimension_semantics=("parallel",),
            vmem_limit_bytes=vmem_limit,
        ),
        cost_estimate=pl.CostEstimate(
            flops=flops, transcendentals=0, bytes_accessed=bytes_accessed),
    )(*operands)

    return out.reshape(B, 1) if x_transposed else out


# ---------------------------------------------------------------------------
# Params / reference / test
# ---------------------------------------------------------------------------

def init_params(key, input_size, hidden_layers):
    """nn.Linear-style params: weight (out, in), bias (out,), U[-1/sqrt(fan_in), 1/sqrt(fan_in)]."""
    params = {}
    sizes = [input_size] + list(hidden_layers) + [1]
    for idx in range(len(sizes) - 1):
        fan_in, fan_out = sizes[idx], sizes[idx + 1]
        key, kw, kb = jax.random.split(key, 3)
        bound = 1.0 / (fan_in ** 0.5)
        params[f"w{idx + 1}"] = jax.random.uniform(
            kw, (fan_out, fan_in), jnp.float32, -bound, bound)
        params[f"b{idx + 1}"] = jax.random.uniform(
            kb, (fan_out,), jnp.float32, -bound, bound)
    return params


def _reference(x, params, compute_dtype=jnp.bfloat16):
    """Pure-JAX reference with matching operand-dtype / f32-accumulation numerics."""
    dn = (((1,), (1,)), ((), ()))  # contract last dim with last dim
    xb = x.astype(compute_dtype)
    w1 = params["w1"].astype(compute_dtype)
    w2 = params["w2"].astype(compute_dtype)
    w3 = params["w3"].astype(compute_dtype)
    h = lax.dot_general(xb, w1, dn, preferred_element_type=jnp.float32)      # (B, H1)
    h = jnp.maximum(h + params["b1"][None, :], 0.0).astype(compute_dtype)
    h = lax.dot_general(h, w2, dn, preferred_element_type=jnp.float32)       # (B, H2)
    h = jnp.maximum(h + params["b2"][None, :], 0.0).astype(compute_dtype)
    o = lax.dot_general(h, w3, dn, preferred_element_type=jnp.float32)       # (B, 1)
    return o + params["b3"][None, :]


if __name__ == "__main__":
    key = jax.random.PRNGKey(0)
    input_size = 32
    hidden_layers = (32, 32)
    dropout_rate = 0.1  # identity at inference (eval mode)

    kx1, kx2, kp = jax.random.split(key, 3)
    params = init_params(kp, input_size, hidden_layers)

    # Small batch: single exact block, PyTorch (B, In) layout.
    x_small = jax.random.normal(kx1, (8, input_size), jnp.float32)
    out_small = jax.block_until_ready(fully_connected_dnn3(x_small, params))
    ref_small = _reference(x_small, params)
    assert out_small.shape == (8, 1), out_small.shape
    assert jnp.allclose(out_small, ref_small, atol=1e-3, rtol=1e-3)

    # Larger batch: 2-block grid (megacore split) + partial last block, both layouts.
    B = 700
    x_big = jax.random.normal(kx2, (B, input_size), jnp.float32)
    ref_big = _reference(x_big, params)
    out_bn = jax.block_until_ready(fully_connected_dnn3(x_big, params))
    out_bl = jax.block_until_ready(
        fully_connected_dnn3(x_big.T, params, x_transposed=True))
    assert out_bn.shape == (B, 1) and out_bl.shape == (B, 1)
    assert jnp.allclose(out_bn, ref_big, atol=1e-3, rtol=1e-3)
    assert jnp.allclose(out_bl, ref_big, atol=1e-3, rtol=1e-3)

    print("KERNEL_OK")
</pallas_src>

<mosaic_0001>
module attributes {stable_mosaic.version = 11 : i64} {
  func.func @_mlp_kernel_bn(%arg0: i32, %arg1: memref<8x32xf32, #tpu.memory_space<vmem>>, %arg2: memref<32x32xbf16, #tpu.memory_space<vmem>>, %arg3: memref<1x32xf32, #tpu.memory_space<vmem>>, %arg4: memref<32x32xbf16, #tpu.memory_space<vmem>>, %arg5: memref<1x32xf32, #tpu.memory_space<vmem>>, %arg6: memref<32x8xbf16, #tpu.memory_space<vmem>>, %arg7: memref<1x1xf32, #tpu.memory_space<vmem>>, %arg8: memref<8x1xf32, #tpu.memory_space<vmem>>) attributes {dimension_semantics = [#tpu.dimension_semantics<parallel>], iteration_bounds = array<i64: 1>, scalar_prefetch = 0 : i64, scratch_operands = 0 : i64, tpu.core_type = #tpu.core_type<tc>, window_params = [{transform_indices = @transform_0, window_bounds = array<i64: 8, 32>}, {pipeline_mode = #tpu.pipeline_mode<synchronous>, transform_indices = @transform_1, window_bounds = array<i64: 32, 32>}, {pipeline_mode = #tpu.pipeline_mode<synchronous>, transform_indices = @transform_2, window_bounds = array<i64: 1, 32>}, {pipeline_mode = #tpu.pipeline_mode<synchronous>, transform_indices = @transform_3, window_bounds = array<i64: 32, 32>}, {pipeline_mode = #tpu.pipeline_mode<synchronous>, transform_indices = @transform_4, window_bounds = array<i64: 1, 32>}, {pipeline_mode = #tpu.pipeline_mode<synchronous>, transform_indices = @transform_5, window_bounds = array<i64: 32, 8>}, {pipeline_mode = #tpu.pipeline_mode<synchronous>, transform_indices = @transform_6, window_bounds = array<i64: 1, 1>}, {transform_indices = @transform_7, window_bounds = array<i64: 8, 1>}]} {
    %c0 = arith.constant 0 : index
    %c0_0 = arith.constant 0 : index
    %0 = vector.load %arg1[%c0, %c0_0] : memref<8x32xf32, #tpu.memory_space<vmem>>, vector<8x32xf32>
    %1 = arith.truncf %0 : vector<8x32xf32> to vector<8x32xbf16>
    %c0_1 = arith.constant 0 : index
    %c0_2 = arith.constant 0 : index
    %2 = vector.load %arg2[%c0_1, %c0_2] : memref<32x32xbf16, #tpu.memory_space<vmem>>, vector<32x32xbf16>
    %cst = arith.constant dense<0.000000e+00> : vector<8x32xf32>
    %3 = tpu.matmul %1, %2, %cst {dimension_numbers = #tpu.dot_dimension_numbers<[1], [0], [0], [1], [0, 0, 1, 1], [], []>} : vector<8x32xbf16>, vector<32x32xbf16>, vector<8x32xf32> -> vector<8x32xf32>
    %c0_3 = arith.constant 0 : index
    %c0_4 = arith.constant 0 : index
    %4 = vector.load %arg3[%c0_3, %c0_4] : memref<1x32xf32, #tpu.memory_space<vmem>>, vector<1x32xf32>
    %5 = vector.broadcast %4 : vector<1x32xf32> to vector<8x32xf32>
    %6 = arith.addf %3, %5 : vector<8x32xf32>
    %cst_5 = arith.constant 0.000000e+00 : f32
    %7 = vector.broadcast %cst_5 : f32 to vector<8x32xf32>
    %8 = arith.maximumf %6, %7 : vector<8x32xf32>
    %9 = arith.truncf %8 : vector<8x32xf32> to vector<8x32xbf16>
    %c0_6 = arith.constant 0 : index
    %c0_7 = arith.constant 0 : index
    %10 = vector.load %arg4[%c0_6, %c0_7] : memref<32x32xbf16, #tpu.memory_space<vmem>>, vector<32x32xbf16>
    %cst_8 = arith.constant dense<0.000000e+00> : vector<8x32xf32>
    %11 = tpu.matmul %9, %10, %cst_8 {dimension_numbers = #tpu.dot_dimension_numbers<[1], [0], [0], [1], [0, 0, 1, 1], [], []>} : vector<8x32xbf16>, vector<32x32xbf16>, vector<8x32xf32> -> vector<8x32xf32>
    %c0_9 = arith.constant 0 : index
    %c0_10 = arith.constant 0 : index
    %12 = vector.load %arg5[%c0_9, %c0_10] : memref<1x32xf32, #tpu.memory_space<vmem>>, vector<1x32xf32>
    %13 = vector.broadcast %12 : vector<1x32xf32> to vector<8x32xf32>
    %14 = arith.addf %11, %13 : vector<8x32xf32>
    %cst_11 = arith.constant 0.000000e+00 : f32
    %15 = vector.broadcast %cst_11 : f32 to vector<8x32xf32>
    %16 = arith.maximumf %14, %15 : vector<8x32xf32>
    %17 = arith.truncf %16 : vector<8x32xf32> to vector<8x32xbf16>
    %c0_12 = arith.constant 0 : index
    %c0_13 = arith.constant 0 : index
    %18 = vector.load %arg6[%c0_12, %c0_13] : memref<32x8xbf16, #tpu.memory_space<vmem>>, vector<32x8xbf16>
    %cst_14 = arith.constant dense<0.000000e+00> : vector<8x8xf32>
    %19 = tpu.matmul %17, %18, %cst_14 {dimension_numbers = #tpu.dot_dimension_numbers<[1], [0], [0], [1], [0, 0, 1, 1], [], []>} : vector<8x32xbf16>, vector<32x8xbf16>, vector<8x8xf32> -> vector<8x8xf32>
    %20 = vector.extract_strided_slice %19 {offsets = [0, 0], sizes = [8, 1], strides = [1, 1]} : vector<8x8xf32> to vector<8x1xf32>
    %c0_15 = arith.constant 0 : index
    %c0_16 = arith.constant 0 : index
    %21 = vector.load %arg7[%c0_15, %c0_16] : memref<1x1xf32, #tpu.memory_space<vmem>>, vector<1x1xf32>
    %22 = vector.broadcast %21 : vector<1x1xf32> to vector<8x1xf32>
    %23 = arith.addf %20, %22 : vector<8x1xf32>
    %c0_17 = arith.constant 0 : index
    %c0_18 = arith.constant 0 : index
    %24 = vector.load %arg8[%c0_17, %c0_18] : memref<8x1xf32, #tpu.memory_space<vmem>>, vector<8x1xf32>
    tpu.vector_store %arg8[%c0_17, %c0_18], %23 {strides = array<i32>} : memref<8x1xf32, #tpu.memory_space<vmem>>, vector<8x1xf32>,
    return
  }
  func.func @transform_0(%arg0: i32) -> (i32, i32) {
    %c0_i32 = arith.constant 0 : i32
    %c0_i32_0 = arith.constant 0 : i32
    return %arg0, %c0_i32 : i32, i32
  }
  func.func @transform_1(%arg0: i32) -> (i32, i32) {
    %c0_i32 = arith.constant 0 : i32
    %c0_i32_0 = arith.constant 0 : i32
    %c0_i32_1 = arith.constant 0 : i32
    return %c0_i32, %c0_i32_0 : i32, i32
  }
  func.func @transform_2(%arg0: i32) -> (i32, i32) {
    %c0_i32 = arith.constant 0 : i32
    %c0_i32_0 = arith.constant 0 : i32
    %c0_i32_1 = arith.constant 0 : i32
    return %c0_i32, %c0_i32_0 : i32, i32
  }
  func.func @transform_3(%arg0: i32) -> (i32, i32) {
    %c0_i32 = arith.constant 0 : i32
    %c0_i32_0 = arith.constant 0 : i32
    %c0_i32_1 = arith.constant 0 : i32
    return %c0_i32, %c0_i32_0 : i32, i32
  }
  func.func @transform_4(%arg0: i32) -> (i32, i32) {
    %c0_i32 = arith.constant 0 : i32
    %c0_i32_0 = arith.constant 0 : i32
    %c0_i32_1 = arith.constant 0 : i32
    return %c0_i32, %c0_i32_0 : i32, i32
  }
  func.func @transform_5(%arg0: i32) -> (i32, i32) {
    %c0_i32 = arith.constant 0 : i32
    %c0_i32_0 = arith.constant 0 : i32
    %c0_i32_1 = arith.constant 0 : i32
    return %c0_i32, %c0_i32_0 : i32, i32
  }
  func.func @transform_6(%arg0: i32) -> (i32, i32) {
    %c0_i32 = arith.constant 0 : i32
    %c0_i32_0 = arith.constant 0 : i32
    %c0_i32_1 = arith.constant 0 : i32
    return %c0_i32, %c0_i32_0 : i32, i32
  }
  func.func @transform_7(%arg0: i32) -> (i32, i32) {
    %c0_i32 = arith.constant 0 : i32
    %c0_i32_0 = arith.constant 0 : i32
    return %arg0, %c0_i32 : i32, i32
  }
}

</mosaic_0001>

<llo_original>
// kernel: tpu_custom_call.1
$region0: #{tpu_custom_call.1}
  #allocation0 [shape = 'u32[]', space=smem, size = 0x4, offset = 0x4, fixed_abs, tag = 'smem constant byte address 0x4 - core index']
  #allocation1 [shape = 'u32[144,128]{1,0:T(1,128)}', space=vmem, size = 0x12000, scoped, tag = 'internal scratch']
  #allocation2 [shape = 'f32[1,1]{1,0:T(1,128)S(1)}', space=vmem, size = 0x200, scoped, tag = 'scoped memory for tpu_custom_call.1']
  %s0 = inlined_call_operand.hbm [shape: f32[8,32], index: 0, kind: input, shape index: {}]
  %s1 = inlined_call_operand.vmem [shape: bf16[32,32], index: 1, kind: input, shape index: {}]
  %s2 = inlined_call_operand.vmem [shape: f32[1,32], index: 2, kind: input, shape index: {}]
  %s3 = inlined_call_operand.vmem [shape: bf16[32,32], index: 3, kind: input, shape index: {}]
  %s4 = inlined_call_operand.vmem [shape: f32[1,32], index: 4, kind: input, shape index: {}]
  %s5 = inlined_call_operand.vmem [shape: bf16[32,8], index: 5, kind: input, shape index: {}]
  %s6 = inlined_call_operand.<no memory space> [shape: f32[1,1], index: 6, kind: input, shape index: {}]
  %s7 = inlined_call_operand.vmem [shape: f32[8,1], index: 7, kind: output, shape index: {}]
  %s8 = sld [smem:[#allocation0]]
  $region42: #{tpu_custom_call.1} parent=0
    _
  %s10 = ssub.s32 1, %s8
  %s11 = scalar_select 0, %s10, %s8
  %v12 = vstv %s6
  %13 = vst [vmem:[#allocation2] sm:$0x1] %v12
  $region1: #{tpu_custom_call.1} parent=0
    #allocation3 [shape = 'u8[4096]{0}', space=vmem, size = 0x1000, scoped, tag = 'input window, operand 0, single buffered']
    #allocation4 [shape = 's32[1]{0}', space=sflag, size = 0x4, scoped, tag = 'scoped memory for tpu_custom_call.1']
    %14 = vsyncpa [#allocation4], 0
    // Predicated region
    $region2: #{tpu_custom_call.1} parent=1 // pred_check
      _
    $region3: #{tpu_custom_call.1} parent=1 // pred_check_branch
      %16 = sbr.rel (0) target = $region5
    $region4: #{tpu_custom_call.1} parent=1 // pred_region
      %s18 = ssub.s32 128, 128
      %19 = vsyncadd [#allocation4], %s18
      %s21 = sshll.u32 [#allocation3], 4
      %s22 = int_to_ptr.vmem [resolvable:$true] %s21
      %24 = dma.hbm_to_vmem [thread:$0]  %s0, 128, %s22, [#allocation4]
    $region5: #{tpu_custom_call.1} parent=1 // pred_fallthru
      _
    // Predicated region
    $region6: #{tpu_custom_call.1} parent=1 // pred_check
      _
    $region7: #{tpu_custom_call.1} parent=1 // pred_check_branch
      %26 = sbr.rel (0) target = $region9
    $region8: #{tpu_custom_call.1} parent=1 // pred_region
      _
    $region9: #{tpu_custom_call.1} parent=1 // pred_fallthru
      _
    // Predicated region
    $region10: #{tpu_custom_call.1} parent=1 // pred_check
      _
    $region11: #{tpu_custom_call.1} parent=1 // pred_check_branch
      %28 = sbr.rel (0) target = $region13
    $region12: #{tpu_custom_call.1} parent=1 // pred_region
      _
    $region13: #{tpu_custom_call.1} parent=1 // pred_fallthru
      _
    // Predicated region
    $region14: #{tpu_custom_call.1} parent=1 // pred_check
      _
    $region15: #{tpu_custom_call.1} parent=1 // pred_check_branch
      %30 = sbr.rel (0) target = $region17
    $region16: #{tpu_custom_call.1} parent=1 // pred_region
      _
    $region17: #{tpu_custom_call.1} parent=1 // pred_fallthru
      _
    // Predicated region
    $region18: #{tpu_custom_call.1} parent=1 // pred_check
      _
    $region19: #{tpu_custom_call.1} parent=1 // pred_check_branch
      %32 = sbr.rel (0) target = $region21
    $region20: #{tpu_custom_call.1} parent=1 // pred_region
      _
    $region21: #{tpu_custom_call.1} parent=1 // pred_fallthru
      _
    // Predicated region
    $region22: #{tpu_custom_call.1} parent=1 // pred_check
      _
    $region23: #{tpu_custom_call.1} parent=1 // pred_check_branch
      %34 = sbr.rel (0) target = $region25
    $region24: #{tpu_custom_call.1} parent=1 // pred_region
      _
    $region25: #{tpu_custom_call.1} parent=1 // pred_fallthru
      _
    // Predicated region
    $region26: #{tpu_custom_call.1} parent=1 // pred_check
      _
    $region27: #{tpu_custom_call.1} parent=1 // pred_check_branch
      %36 = sbr.rel (0) target = $region29
    $region28: #{tpu_custom_call.1} parent=1 // pred_region
      _
    $region29: #{tpu_custom_call.1} parent=1 // pred_fallthru
      _
    // Predicated region
    $region30: #{tpu_custom_call.1} parent=1 // pred_check
      _
    $region31: #{tpu_custom_call.1} parent=1 // pred_check_branch
      %38 = sbr.rel (0) target = $region33
    $region32: #{tpu_custom_call.1} parent=1 // pred_region
      %39 = dma.done [#allocation4], 128
    $region33: #{tpu_custom_call.1} parent=1 // pred_fallthru
      _
    %v41 = vld [vmem:[#allocation3] sm:$0xff]
    %v42 = vpack.c.bf16 %v41, %v41
    %v43 = vld [vmem:[%s1] sm:$0xf]
    %v44 = vld [vmem:[%s1 + $0x4] sm:$0xf]
    %v45 = vld [vmem:[%s1 + $0x8] sm:$0xf]
    %v46 = vld [vmem:[%s1 + $0xc] sm:$0xf]
    %v47 = vld [vmem:[%s2] sm:$0x1]
    %v49 = vlaneseq
    %v50 = vshrl.u32 %v49, 7
    %v51 = vsub.s32 0, %v50
    %v52 = vrot.slane %v47, %v51
    %v58 = vunpack.c.l.b16 %v43
    %v59 = vunpack.c.l.b16 %v44
    %v60 = vunpack.c.l.b16 %v45
    %v61 = vunpack.c.l.b16 %v46
    %v62 = vpack.c.b16 %v59, %v58
    %v63 = vpack.c.b16 %v61, %v60
    %vm66 = vcmask 261120
    %v68 = vsel %vm66, %v42, 0
    %70 = vmatprep.subr.bf16.mxu0 0
    %71 = vmatpush1.bf16.msra.mxu0 %v62
    %72 = vmatprep.subr.bf16.mxu0 0
    %73 = vmatpush1.bf16.msra.mxu0 %v63
    %74 = vmatprep.subr.bf16.mxu0 0
    %75 = vmatpush1.bf16.msra.mxu0 0
    %76 = vmatprep.subr.bf16.mxu0 0
    %77 = vmatpush1.bf16.msra.mxu0 0
    %78 = vmatprep.subr.bf16.mxu0 0
    %79 = vmatpush1.bf16.msra.mxu0 0
    %80 = vmatprep.subr.bf16.mxu0 0
    %81 = vmatpush1.bf16.msra.mxu0 0
    %82 = vmatprep.subr.bf16.mxu0 0
    %83 = vmatpush1.bf16.msra.mxu0 0
    %84 = vmatprep.subr.bf16.mxu0 0
    %85 = vmatpush1.bf16.msra.mxu0 0
    %86 = vmatprep.subr.bf16.mxu0 0
    %87 = vmatpush1.bf16.msra.mxu0 0
    %88 = vmatprep.subr.bf16.mxu0 0
    %89 = vmatpush1.bf16.msra.mxu0 0
    %90 = vmatprep.subr.bf16.mxu0 0
    %91 = vmatpush1.bf16.msra.mxu0 0
    %92 = vmatprep.subr.bf16.mxu0 0
    %93 = vmatpush1.bf16.msra.mxu0 0
    %94 = vmatprep.subr.bf16.mxu0 0
    %95 = vmatpush1.bf16.msra.mxu0 0
    %96 = vmatprep.subr.bf16.mxu0 0
    %97 = vmatpush1.bf16.msra.mxu0 0
    %98 = vmatprep.subr.bf16.mxu0 0
    %99 = vmatpush1.bf16.msra.mxu0 0
    %100 = vmatprep.subr.bf16.mxu0 0
    %101 = vmatpush1.bf16.msra.mxu0 0
    %102 = vmatprep.mubr.bf16.mxu0 0
    %103 = vmatmul.mubr.bf16.gmra.mrb[0].mxu0 %v68
    %v104 = vpop.f32.mrb[0].mxu0
    %v105 = vadd.f32 %v52, %v104
    %v106 = vpop.f32.mrb[0].mxu0
    %v107 = vpop.f32.mrb[0].mxu0
    %v108 = vpop.f32.mrb[0].mxu0
    %109 = vdwg.mxu0
    %v110 = vmax.f32 %v105, 0.0
    %v111 = vpack.c.bf16 %v110, %v110
    %v112 = vld [vmem:[%s3] sm:$0xf]
    %v113 = vld [vmem:[%s3 + $0x4] sm:$0xf]
    %v114 = vld [vmem:[%s3 + $0x8] sm:$0xf]
    %v115 = vld [vmem:[%s3 + $0xc] sm:$0xf]
    %v116 = vld [vmem:[%s4] sm:$0x1]
    %v118 = vlaneseq
    %v119 = vshrl.u32 %v118, 7
    %v120 = vsub.s32 0, %v119
    %v121 = vrot.slane %v116, %v120
    %v127 = vunpack.c.l.b16 %v112
    %v128 = vunpack.c.l.b16 %v113
    %v129 = vunpack.c.l.b16 %v114
    %v130 = vunpack.c.l.b16 %v115
    %v131 = vpack.c.b16 %v128, %v127
    %v132 = vpack.c.b16 %v130, %v129
    %v136 = vsel %vm66, %v111, 0
    %138 = vmatprep.subr.bf16.mxu0 0
    %139 = vmatpush1.bf16.msra.mxu0 %v131
    %140 = vmatprep.subr.bf16.mxu0 0
    %141 = vmatpush1.bf16.msra.mxu0 %v132
    %142 = vmatprep.subr.bf16.mxu0 0
    %143 = vmatpush1.bf16.msra.mxu0 0
    %144 = vmatprep.subr.bf16.mxu0 0
    %145 = vmatpush1.bf16.msra.mxu0 0
    %146 = vmatprep.subr.bf16.mxu0 0
    %147 = vmatpush1.bf16.msra.mxu0 0
    %148 = vmatprep.subr.bf16.mxu0 0
    %149 = vmatpush1.bf16.msra.mxu0 0
    %150 = vmatprep.subr.bf16.mxu0 0
    %151 = vmatpush1.bf16.msra.mxu0 0
    %152 = vmatprep.subr.bf16.mxu0 0
    %153 = vmatpush1.bf16.msra.mxu0 0
    %154 = vmatprep.subr.bf16.mxu0 0
    %155 = vmatpush1.bf16.msra.mxu0 0
    %156 = vmatprep.subr.bf16.mxu0 0
    %157 = vmatpush1.bf16.msra.mxu0 0
    %158 = vmatprep.subr.bf16.mxu0 0
    %159 = vmatpush1.bf16.msra.mxu0 0
    %160 = vmatprep.subr.bf16.mxu0 0
    %161 = vmatpush1.bf16.msra.mxu0 0
    %162 = vmatprep.subr.bf16.mxu0 0
    %163 = vmatpush1.bf16.msra.mxu0 0
    %164 = vmatprep.subr.bf16.mxu0 0
    %165 = vmatpush1.bf16.msra.mxu0 0
    %166 = vmatprep.subr.bf16.mxu0 0
    %167 = vmatpush1.bf16.msra.mxu0 0
    %168 = vmatprep.subr.bf16.mxu0 0
    %169 = vmatpush1.bf16.msra.mxu0 0
    %170 = vmatprep.mubr.bf16.mxu0 0
    %171 = vmatmul.mubr.bf16.gmra.mrb[0].mxu0 %v136
    %v172 = vpop.f32.mrb[0].mxu0
    %v173 = vadd.f32 %v121, %v172
    %v174 = vpop.f32.mrb[0].mxu0
    %v175 = vpop.f32.mrb[0].mxu0
    %v176 = vpop.f32.mrb[0].mxu0
    %177 = vdwg.mxu0
    %v178 = vmax.f32 %v173, 0.0
    %v179 = vpack.c.bf16 %v178, %v178
    %v180 = vld [vmem:[%s5] sm:$0xf]
    %v181 = vld [vmem:[%s5 + $0x4] sm:$0xf]
    %v182 = vld [vmem:[%s5 + $0x8] sm:$0xf]
    %v183 = vld [vmem:[%s5 + $0xc] sm:$0xf]
    %v188 = vunpack.c.l.b16 %v180
    %v189 = vunpack.c.l.b16 %v181
    %v190 = vunpack.c.l.b16 %v182
    %v191 = vunpack.c.l.b16 %v183
    %v192 = vpack.c.b16 %v189, %v188
    %v193 = vpack.c.b16 %v191, %v190
    %v197 = vsel %vm66, %v179, 0
    %199 = vmatprep.subr.bf16.mxu0 0
    %200 = vmatpush1.bf16.msra.mxu0 %v192
    %201 = vmatprep.subr.bf16.mxu0 0
    %202 = vmatpush1.bf16.msra.mxu0 %v193
    %203 = vmatprep.subr.bf16.mxu0 0
    %204 = vmatpush1.bf16.msra.mxu0 0
    %205 = vmatprep.subr.bf16.mxu0 0
    %206 = vmatpush1.bf16.msra.mxu0 0
    %207 = vmatprep.subr.bf16.mxu0 0
    %208 = vmatpush1.bf16.msra.mxu0 0
    %209 = vmatprep.subr.bf16.mxu0 0
    %210 = vmatpush1.bf16.msra.mxu0 0
    %211 = vmatprep.subr.bf16.mxu0 0
    %212 = vmatpush1.bf16.msra.mxu0 0
    %213 = vmatprep.subr.bf16.mxu0 0
    %214 = vmatpush1.bf16.msra.mxu0 0
    %215 = vmatprep.subr.bf16.mxu0 0
    %216 = vmatpush1.bf16.msra.mxu0 0
    %217 = vmatprep.subr.bf16.mxu0 0
    %218 = vmatpush1.bf16.msra.mxu0 0
    %219 = vmatprep.subr.bf16.mxu0 0
    %220 = vmatpush1.bf16.msra.mxu0 0
    %221 = vmatprep.subr.bf16.mxu0 0
    %222 = vmatpush1.bf16.msra.mxu0 0
    %223 = vmatprep.subr.bf16.mxu0 0
    %224 = vmatpush1.bf16.msra.mxu0 0
    %225 = vmatprep.subr.bf16.mxu0 0
    %226 = vmatpush1.bf16.msra.mxu0 0
    %227 = vmatprep.subr.bf16.mxu0 0
    %228 = vmatpush1.bf16.msra.mxu0 0
    %229 = vmatprep.subr.bf16.mxu0 0
    %230 = vmatpush1.bf16.msra.mxu0 0
    %231 = vmatprep.mubr.bf16.mxu0 0
    %232 = vmatmul.mubr.bf16.gmra.mrb[0].mxu0 %v197
    %v233 = vpop.f32.mrb[0].mxu0
    %v234 = vadd.f32 0.0, %v233
    %v235 = vpop.f32.mrb[0].mxu0
    %v236 = vpop.f32.mrb[0].mxu0
    %v237 = vpop.f32.mrb[0].mxu0
    %238 = vdwg.mxu0
    %v239 = vld [vmem:[#allocation2] sm:$0x1]
    %v241 = vlaneseq
    %v242 = vshrl.u32 %v241, 7
    %v243 = vsub.s32 0, %v242
    %v244 = vrot.slane %v239, %v243
    %v246 = vadd.f32 %v234, %v244
    %vm247 = vcmask 7168
    %248 = vst.msk [vmem:[%s7] sm:$0xff] %vm247, %v246
    // Predicated region
    $region34: #{tpu_custom_call.1} parent=1 // pred_check
      _
    $region35: #{tpu_custom_call.1} parent=1 // pred_check_branch
      %250 = sbr.rel (0) target = $region37
    $region36: #{tpu_custom_call.1} parent=1 // pred_region
      _
    $region37: #{tpu_custom_call.1} parent=1 // pred_fallthru
      _
    // Predicated region
    $region38: #{tpu_custom_call.1} parent=1 // pred_check
      _
    $region39: #{tpu_custom_call.1} parent=1 // pred_check_branch
      %252 = sbr.rel (0) target = $region41
    $region40: #{tpu_custom_call.1} parent=1 // pred_region
      _
    $region41: #{tpu_custom_call.1} parent=1 // pred_fallthru
      _
    %253 = vsyncpa [#allocation4], 1

</llo_original>
